<compile_context>
chip_gen: v7x
topology: tpu7x:2x2x1
jax: 0.10.0
libtpu: 0.0.40
codegen_flags: <defaults>
</compile_context>

<pallas_src>
import functools

import jax
import jax.numpy as jnp
from jax.experimental import pallas as pl
from jax.experimental.pallas import tpu as pltpu


def _triplet_loss_kernel(a_ref, p_ref, n_ref, partial_ref, *, margin, batch, tile_b):
    # Upcast to f32 on the VPU (inputs may be stored as bf16 in HBM).
    a = a_ref[...].astype(jnp.float32)
    p = p_ref[...].astype(jnp.float32)
    n = n_ref[...].astype(jnp.float32)

    dpos = a - p
    dneg = a - n
    # Fused single cross-lane reduction over the feature axis (keepdims avoids
    # 1-D relayouts): sum((a-p)^2) - sum((a-n)^2) == sum((a-p)^2 - (a-n)^2).
    diff = jnp.sum(dpos * dpos - dneg * dneg, axis=1, keepdims=True)    # (tile_b, 1)
    losses = jnp.maximum(diff + jnp.float32(margin), 0.0)               # (tile_b, 1)

    if batch % tile_b != 0:
        # Mask rows of the last padded tile; without this each padded row would
        # add max(margin, 0) (or garbage/NaN) to the sum.
        row = (pl.program_id(0) * tile_b
               + jax.lax.broadcasted_iota(jnp.int32, losses.shape, 0))
        losses = jnp.where(row < batch, losses, jnp.float32(0.0))

    # One scalar partial per batch tile; final reduce happens in the wrapper.
    partial_ref[0, 0] = jnp.sum(losses)


def _choose_batch_tile(B, D, dtype_bytes, target_block_bytes=1 << 20):
    """~1 MiB per input block (3 inputs x 2 pipeline buffers ~= 6 MiB VMEM,
    safe on v5e/v6e/v7x scoped-VMEM defaults), multiple of 8, or the full B."""
    rows = max(8, (target_block_bytes // max(1, D * dtype_bytes)) // 8 * 8)
    if rows >= B:
        return B  # single block: full-extent batch dim, no (8,128) constraint issues
    return rows


def triplet_loss(anchor, positive, negative, margin, size_average=True, *, tile_b=None):
    """Pallas TPU triplet loss. anchor/positive/negative: (B, D)."""
    B, D = anchor.shape
    dtype_bytes = jnp.dtype(anchor.dtype).itemsize
    if tile_b is None:
        tile_b = _choose_batch_tile(B, D, dtype_bytes)
    if tile_b < B:
        tile_b = max(8, (tile_b // 8) * 8)  # keep sublane dim a multiple of 8
    else:
        tile_b = B
    num_tiles = pl.cdiv(B, tile_b)

    # margin is a compile-time constant (it is a ctor constant in the nn.Module).
    # TODO(synk): pass margin via an SMEM scalar if it must vary at runtime
    # without triggering recompiles.
    kernel = functools.partial(
        _triplet_loss_kernel, margin=float(margin), batch=B, tile_b=tile_b)

    blk = lambda i: (i, 0)
    partials = pl.pallas_call(
        kernel,
        out_shape=jax.ShapeDtypeStruct((num_tiles, 1), jnp.float32),
        grid_spec=pl.GridSpec(
            grid=(num_tiles,),
            in_specs=[
                pl.BlockSpec((tile_b, D), blk),
                pl.BlockSpec((tile_b, D), blk),
                pl.BlockSpec((tile_b, D), blk),
            ],
            out_specs=pl.BlockSpec((1, 1), blk, memory_space=pltpu.SMEM),
        ),
        compiler_params=pltpu.CompilerParams(
            dimension_semantics=("parallel",),   # independent tiles -> megacore on v7x
        ),
        cost_estimate=pl.CostEstimate(
            flops=6 * B * D,
            transcendentals=0,
            bytes_accessed=3 * B * D * dtype_bytes + num_tiles * 4,
        ),
    )(anchor, positive, negative)
    # TODO(synk): when D << 128, pack 128//D samples per lane row in the wrapper
    # and do a segmented in-kernel reduce to restore full vreg lane occupancy
    # (immaterial here: the kernel is HBM-bandwidth bound at ~0.5 flop/byte).

    total = jnp.sum(partials)  # tiny (num_tiles,) reduce, done in XLA
    return total / jnp.float32(B) if size_average else total


def _reference(anchor, positive, negative, margin, size_average=True):
    dp = jnp.sum((anchor - positive) ** 2, axis=1)
    dn = jnp.sum((anchor - negative) ** 2, axis=1)
    losses = jnp.maximum(dp - dn + margin, 0.0)
    return jnp.mean(losses) if size_average else jnp.sum(losses)


if __name__ == "__main__":
    margin = 1.0
    D = 32
    keys = jax.random.split(jax.random.PRNGKey(0), 6)

    # --- small shape matching the module's (batch, embedding_dim) inputs ---
    B = 8
    anchor = jax.random.normal(keys[0], (B, D), dtype=jnp.float32)
    positive = jax.random.normal(keys[1], (B, D), dtype=jnp.float32)
    negative = jax.random.normal(keys[2], (B, D), dtype=jnp.float32)

    loss_mean = triplet_loss(anchor, positive, negative, margin, size_average=True)
    loss_sum = triplet_loss(anchor, positive, negative, margin, size_average=False)
    jax.block_until_ready((loss_mean, loss_sum))

    assert jnp.allclose(loss_mean, _reference(anchor, positive, negative, margin, True),
                        atol=1e-5, rtol=1e-5)
    assert jnp.allclose(loss_sum, _reference(anchor, positive, negative, margin, False),
                        atol=1e-5, rtol=1e-5)

    # --- force multi-tile + ragged last tile to exercise the pipelined/masked path ---
    B2 = 20
    a2 = jax.random.normal(keys[3], (B2, D), dtype=jnp.float32)
    p2 = jax.random.normal(keys[4], (B2, D), dtype=jnp.float32)
    n2 = jax.random.normal(keys[5], (B2, D), dtype=jnp.float32)

    t_mean = triplet_loss(a2, p2, n2, margin, size_average=True, tile_b=8)
    t_sum = triplet_loss(a2, p2, n2, margin, size_average=False, tile_b=8)
    jax.block_until_ready((t_mean, t_sum))

    assert jnp.allclose(t_mean, _reference(a2, p2, n2, margin, True), atol=1e-5, rtol=1e-5)
    assert jnp.allclose(t_sum, _reference(a2, p2, n2, margin, False), atol=1e-5, rtol=1e-5)

    # bf16 inputs (half the HBM traffic on a purely bandwidth-bound kernel).
    bf_mean = triplet_loss(anchor.astype(jnp.bfloat16), positive.astype(jnp.bfloat16),
                           negative.astype(jnp.bfloat16), margin, size_average=True)
    jax.block_until_ready(bf_mean)
    assert jnp.allclose(bf_mean, _reference(anchor, positive, negative, margin, True),
                        atol=5e-2, rtol=5e-2)

    print("KERNEL_OK")
</pallas_src>

<mosaic_0001>
module attributes {stable_mosaic.version = 11 : i64} {
  func.func @_triplet_loss_kernel(%arg0: i32, %arg1: memref<8x32xf32, #tpu.memory_space<vmem>>, %arg2: memref<8x32xf32, #tpu.memory_space<vmem>>, %arg3: memref<8x32xf32, #tpu.memory_space<vmem>>, %arg4: memref<1x1xf32, #tpu.memory_space<smem>>) attributes {dimension_semantics = [#tpu.dimension_semantics<parallel>], iteration_bounds = array<i64: 1>, scalar_prefetch = 0 : i64, scratch_operands = 0 : i64, tpu.core_type = #tpu.core_type<tc>, window_params = [{transform_indices = @transform_0, window_bounds = array<i64: 8, 32>}, {transform_indices = @transform_1, window_bounds = array<i64: 8, 32>}, {transform_indices = @transform_2, window_bounds = array<i64: 8, 32>}, {transform_indices = @transform_3, window_bounds = array<i64: 1, 1>}]} {
    %c0 = arith.constant 0 : index
    %c0_0 = arith.constant 0 : index
    %0 = vector.load %arg1[%c0, %c0_0] : memref<8x32xf32, #tpu.memory_space<vmem>>, vector<8x32xf32>
    %c0_1 = arith.constant 0 : index
    %c0_2 = arith.constant 0 : index
    %1 = vector.load %arg2[%c0_1, %c0_2] : memref<8x32xf32, #tpu.memory_space<vmem>>, vector<8x32xf32>
    %c0_3 = arith.constant 0 : index
    %c0_4 = arith.constant 0 : index
    %2 = vector.load %arg3[%c0_3, %c0_4] : memref<8x32xf32, #tpu.memory_space<vmem>>, vector<8x32xf32>
    %3 = arith.subf %0, %1 : vector<8x32xf32>
    %4 = arith.subf %0, %2 : vector<8x32xf32>
    %5 = arith.mulf %3, %3 : vector<8x32xf32>
    %6 = arith.mulf %4, %4 : vector<8x32xf32>
    %7 = arith.subf %5, %6 : vector<8x32xf32>
    %cst = arith.constant dense<0.000000e+00> : vector<8xf32>
    %8 = vector.multi_reduction <add>, %7, %cst [1] : vector<8x32xf32> to vector<8xf32>
    %9 = vector.shape_cast %8 : vector<8xf32> to vector<8x1xf32>
    %cst_5 = arith.constant 1.000000e+00 : f32
    %10 = vector.broadcast %cst_5 : f32 to vector<8x1xf32>
    %11 = arith.addf %9, %10 : vector<8x1xf32>
    %cst_6 = arith.constant 0.000000e+00 : f32
    %12 = vector.broadcast %cst_6 : f32 to vector<8x1xf32>
    %13 = arith.maximumf %11, %12 : vector<8x1xf32>
    %14 = vector.shape_cast %13 : vector<8x1xf32> to vector<1x8x1xf32>
    %cst_7 = arith.constant dense<0.000000e+00> : vector<1xf32>
    %15 = vector.multi_reduction <add>, %14, %cst_7 [1, 2] : vector<1x8x1xf32> to vector<1xf32>
    %16 = vector.shape_cast %15 : vector<1xf32> to vector<1x1x1xf32>
    %17 = vector.extract %16[0, 0, 0] : f32 from vector<1x1x1xf32>
    %c0_8 = arith.constant 0 : index
    %c0_9 = arith.constant 0 : index
    %18 = memref.load %arg4[%c0_8, %c0_9] : memref<1x1xf32, #tpu.memory_space<smem>>
    memref.store %17, %arg4[%c0_8, %c0_9] : memref<1x1xf32, #tpu.memory_space<smem>>
    return
  }
  func.func @transform_0(%arg0: i32) -> (i32, i32) {
    %c0_i32 = arith.constant 0 : i32
    %c0_i32_0 = arith.constant 0 : i32
    return %arg0, %c0_i32 : i32, i32
  }
  func.func @transform_1(%arg0: i32) -> (i32, i32) {
    %c0_i32 = arith.constant 0 : i32
    %c0_i32_0 = arith.constant 0 : i32
    return %arg0, %c0_i32 : i32, i32
  }
  func.func @transform_2(%arg0: i32) -> (i32, i32) {
    %c0_i32 = arith.constant 0 : i32
    %c0_i32_0 = arith.constant 0 : i32
    return %arg0, %c0_i32 : i32, i32
  }
  func.func @transform_3(%arg0: i32) -> (i32, i32) {
    %c0_i32 = arith.constant 0 : i32
    %c0_i32_0 = arith.constant 0 : i32
    return %arg0, %c0_i32 : i32, i32
  }
}

</mosaic_0001>

<llo_original>
// kernel: tpu_custom_call.1
$region0: #{tpu_custom_call.1}
  #allocation0 [shape = 'u32[]', space=smem, size = 0x4, offset = 0x4, fixed_abs, tag = 'smem constant byte address 0x4 - core index']
  #allocation1 [shape = 'u32[144,128]{1,0:T(1,128)}', space=vmem, size = 0x12000, scoped, tag = 'internal scratch']
  %s0 = inlined_call_operand.hbm [shape: f32[8,32], index: 0, kind: input, shape index: {}]
  %s1 = inlined_call_operand.hbm [shape: f32[8,32], index: 1, kind: input, shape index: {}]
  %s2 = inlined_call_operand.hbm [shape: f32[8,32], index: 2, kind: input, shape index: {}]
  %s3 = inlined_call_operand.hbm [shape: f32[1,1], index: 3, kind: output, shape index: {}]
  %s4 = sld [smem:[#allocation0]]
  $region34: #{tpu_custom_call.1} parent=0
    _
  %s6 = ssub.s32 1, %s4
  %s7 = scalar_select 0, %s6, %s4
  $region1: #{tpu_custom_call.1} parent=0
    #allocation2 [shape = 'u8[4096]{0}', space=vmem, size = 0x1000, scoped, tag = 'input window, operand 0, single buffered']
    #allocation3 [shape = 's32[1]{0}', space=sflag, size = 0x4, scoped, tag = 'scoped memory for tpu_custom_call.1']
    #allocation4 [shape = 's32[1]{0}', space=sflag, size = 0x4, scoped, tag = 'scoped memory for tpu_custom_call.1']
    #allocation5 [shape = 'u8[4096]{0}', space=vmem, size = 0x1000, scoped, tag = 'input window, operand 1, single buffered']
    #allocation6 [shape = 's32[1]{0}', space=sflag, size = 0x4, scoped, tag = 'scoped memory for tpu_custom_call.1']
    #allocation7 [shape = 'u8[4096]{0}', space=vmem, size = 0x1000, scoped, tag = 'input window, operand 2, single buffered']
    #allocation8 [shape = 'u8[512]{0}', space=smem, size = 0x200, scoped, tag = 'output window, operand 0, single buffered']
    %8 = vsyncpa [#allocation3], 0
    %9 = vsyncpa [#allocation6], 0
    %10 = vsyncpa [#allocation4], 0
    // Predicated region
    $region2: #{tpu_custom_call.1} parent=1 // pred_check
      _
    $region3: #{tpu_custom_call.1} parent=1 // pred_check_branch
      %12 = sbr.rel (0) target = $region5
    $region4: #{tpu_custom_call.1} parent=1 // pred_region
      %s14 = ssub.s32 128, 128
      %15 = vsyncadd [#allocation3], %s14
      %s17 = sshll.u32 [#allocation2], 4
      %s18 = int_to_ptr.vmem [resolvable:$true] %s17
      %20 = dma.hbm_to_vmem [thread:$0]  %s0, 128, %s18, [#allocation3]
    $region5: #{tpu_custom_call.1} parent=1 // pred_fallthru
      _
    // Predicated region
    $region6: #{tpu_custom_call.1} parent=1 // pred_check
      _
    $region7: #{tpu_custom_call.1} parent=1 // pred_check_branch
      %22 = sbr.rel (0) target = $region9
    $region8: #{tpu_custom_call.1} parent=1 // pred_region
      %s24 = ssub.s32 128, 128
      %25 = vsyncadd [#allocation6], %s24
      %s27 = sshll.u32 [#allocation5], 4
      %s28 = int_to_ptr.vmem [resolvable:$true] %s27
      %30 = dma.hbm_to_vmem [thread:$0]  %s1, 128, %s28, [#allocation6]
    $region9: #{tpu_custom_call.1} parent=1 // pred_fallthru
      _
    // Predicated region
    $region10: #{tpu_custom_call.1} parent=1 // pred_check
      _
    $region11: #{tpu_custom_call.1} parent=1 // pred_check_branch
      %32 = sbr.rel (0) target = $region13
    $region12: #{tpu_custom_call.1} parent=1 // pred_region
      %s34 = ssub.s32 128, 128
      %35 = vsyncadd [#allocation6], %s34
      %s37 = sshll.u32 [#allocation7], 4
      %s38 = int_to_ptr.vmem [resolvable:$true] %s37
      %40 = dma.hbm_to_vmem [thread:$0]  %s2, 128, %s38, [#allocation6]
    $region13: #{tpu_custom_call.1} parent=1 // pred_fallthru
      _
    // Predicated region
    $region14: #{tpu_custom_call.1} parent=1 // pred_check
      _
    $region15: #{tpu_custom_call.1} parent=1 // pred_check_branch
      %42 = sbr.rel (0) target = $region17
    $region16: #{tpu_custom_call.1} parent=1 // pred_region
      %43 = dma.done [#allocation3], 128
    $region17: #{tpu_custom_call.1} parent=1 // pred_fallthru
      _
    // Predicated region
    $region18: #{tpu_custom_call.1} parent=1 // pred_check
      _
    $region19: #{tpu_custom_call.1} parent=1 // pred_check_branch
      %45 = sbr.rel (0) target = $region21
    $region20: #{tpu_custom_call.1} parent=1 // pred_region
      %46 = dma.done [#allocation6], 128
    $region21: #{tpu_custom_call.1} parent=1 // pred_fallthru
      _
    // Predicated region
    $region22: #{tpu_custom_call.1} parent=1 // pred_check
      _
    $region23: #{tpu_custom_call.1} parent=1 // pred_check_branch
      %48 = sbr.rel (0) target = $region25
    $region24: #{tpu_custom_call.1} parent=1 // pred_region
      %49 = dma.done [#allocation6], 128
    $region25: #{tpu_custom_call.1} parent=1 // pred_fallthru
      _
    %v50 = vld [vmem:[#allocation2] sm:$0xff]
    %v51 = vld [vmem:[#allocation5] sm:$0xff]
    %v52 = vld [vmem:[#allocation7] sm:$0xff]
    %v53 = vsub.f32 %v50, %v51
    %v54 = vsub.f32 %v50, %v52
    %v55 = vmul.f32 %v53, %v53
    %v56 = vmul.f32 %v54, %v54
    %v57 = vsub.f32 %v55, %v56
    %vm58 = vcmask 261120
    %v59 = vsel %vm58, %v57, 0.0
    %60 = vadd.xlane.f32.xlu0 %v59
    %v61 = vpop.xlane.xlu0 %60
    %v62 = vadd.f32 %v61, 1.0
    %v63 = vmax.f32 %v62, 0.0
    %vm64 = vcmask 7168
    %v65 = vsel %vm64, %v63, 0.0
    %66 = vadd.xlane.f32.xlu0 %v65
    %v67 = vpop.xlane.xlu0 %66
    %v68 = vrot.slane %v67, 4
    %v69 = vadd.f32 %v67, %v68
    %v70 = vrot.slane %v69, 2
    %v71 = vadd.f32 %v69, %v70
    %v72 = vrot.slane %v71, 1
    %v73 = vadd.f32 %v71, %v72
    %s74 = vtos %v73
    %s75 = scalar_lea.smem [#allocation8], 0
    %76 = sst [smem:[%s75]] %s74
    // Predicated region
    $region26: #{tpu_custom_call.1} parent=1 // pred_check
      _
    $region27: #{tpu_custom_call.1} parent=1 // pred_check_branch
      %78 = sbr.rel (0) target = $region29
    $region28: #{tpu_custom_call.1} parent=1 // pred_region
      %s80 = ssub.s32 16, 16
      %81 = vsyncadd [#allocation4], %s80
      %84 = dma.smem_to_hbm [#allocation8], 16, %s3, [#allocation4]
    $region29: #{tpu_custom_call.1} parent=1 // pred_fallthru
      _
    // Predicated region
    $region30: #{tpu_custom_call.1} parent=1 // pred_check
      _
    $region31: #{tpu_custom_call.1} parent=1 // pred_check_branch
      %86 = sbr.rel (0) target = $region33
    $region32: #{tpu_custom_call.1} parent=1 // pred_region
      %87 = dma.done [#allocation4], 16
    $region33: #{tpu_custom_call.1} parent=1 // pred_fallthru
      _
    %88 = sfence
    %89 = vsyncpa [#allocation3], 1
    %90 = vsyncpa [#allocation6], 1
    %91 = vsyncpa [#allocation4], 1

</llo_original>
